<compile_context>
chip_gen: v7x
topology: tpu7x:2x2x1
jax: 0.10.0
libtpu: 0.0.40
codegen_flags: <defaults>
</compile_context>

<pallas_src>
import math

import jax
import jax.numpy as jnp
from jax import lax
from jax.experimental import pallas as pl
from jax.experimental.pallas import tpu as pltpu

BN_EPS = 1e-5


def encoder_kernel(x_ref, w_ref, o_ref):
    # x_ref: (B, D) f32 in VMEM; w_ref: (8, D) sublane-replicated folded weight
    # in VMEM; o_ref: (B, 1) f32 output.
    x = x_ref[...]                                   # (B, D)
    w = w_ref[...]                                   # (8, D)

    # ---- folded fc31(fc21(fc1(x))) (bias dropped; BN cancels it exactly) ----
    if x.shape[0] == w.shape[0]:
        prod = x * w                                 # aligned whole-vreg VPU mul
    else:
        prod = x * w[0:1]                            # fallback: sublane broadcast
    mu = jnp.sum(prod, axis=-1, keepdims=True)       # (B, 1)  XLU lane reduce

    # ---- BatchNorm1d(1), training mode: two-pass batch statistics ----------
    B = x.shape[0]
    inv_b = 1.0 / B
    mean = jnp.sum(mu) * inv_b
    d = mu - mean                                    # centered mu
    ss_c = jnp.sum(d * d)                            # = B * var (biased)
    var = ss_c * inv_b
    inv_std = lax.rsqrt(var + BN_EPS)                # EUP

    # ---- mu_bn / ||mu_bn|| * tanh(||mu_bn||) * (2/pi) -----------------------
    # ||mu_bn||^2 = ss_c / (var + eps): no extra vector reduction.
    # (ss_c == 0 gives 0*inf = NaN, exactly like the PyTorch 0/0 reference.)
    frob2 = ss_c * (inv_std * inv_std)
    inv_nrm = lax.rsqrt(frob2)                       # EUP
    nrm = frob2 * inv_nrm                            # == sqrt(frob2)

    scale = inv_std * inv_nrm * jnp.tanh(nrm) * (2.0 / math.pi)
    o_ref[...] = d * scale                           # single fused vector pass


def encoder_forward(x, w_rep):
    """x: (B, C, H, W) float32; w_rep: (8, D) sublane-replicated folded weight."""
    B = x.shape[0]
    D = w_rep.shape[1]
    L = 1
    x_flat = x.reshape(B, -1).astype(jnp.float32)    # matches x.reshape(B, -1)
    assert x_flat.shape[1] == D

    cost = pl.CostEstimate(
        flops=2 * B * D,                             # matvec dominates
        transcendentals=3,                           # 2x rsqrt + tanh
        bytes_accessed=(B * D + w_rep.size + B * L) * 4,
    )
    vmem = pl.BlockSpec(memory_space=pltpu.MemorySpace.VMEM)
    return pl.pallas_call(
        encoder_kernel,
        out_shape=jax.ShapeDtypeStruct((B, L), jnp.float32),
        in_specs=[vmem, vmem],
        out_specs=vmem,
        cost_estimate=cost,
    )(x_flat, w_rep)


def init_params(key, in_dim, hidden_dim, latent_dim):
    """PyTorch-Linear-style init: U(-1/sqrt(fan_in), +1/sqrt(fan_in)).
    Weights stored as (in_features, out_features); biases as (1, out_features)."""
    ks = jax.random.split(key, 6)

    def lin(kw, kb, fan_in, fan_out):
        bound = 1.0 / math.sqrt(fan_in)
        w = jax.random.uniform(kw, (fan_in, fan_out), jnp.float32, -bound, bound)
        b = jax.random.uniform(kb, (1, fan_out), jnp.float32, -bound, bound)
        return w, b

    w1, b1 = lin(ks[0], ks[1], in_dim, hidden_dim)
    w21, b21 = lin(ks[2], ks[3], hidden_dim, hidden_dim)
    w31, b31 = lin(ks[4], ks[5], hidden_dim, latent_dim)
    return w1, b1, w21, b21, w31, b31


def fold_params(params, sublanes=8):
    """One-time exact fold of fc1 -> fc21 -> fc31 into a single weight row.

    Biases are dropped entirely: training-mode BatchNorm (beta=0) subtracts the
    batch mean, which absorbs any constant bias exactly.  The row is replicated
    across 8 sublanes (one vreg) so the in-kernel multiply needs no broadcast;
    padded VMEM footprint is unchanged (a (1, D) block already pads to 8 rows).
    Done at parameter-build time, NOT per call."""
    w1, _b1, w21, _b21, w31, _b31 = params
    w_fold = (w1 @ w21 @ w31).T                      # (L, D)
    assert w_fold.shape[0] == 1, "BatchNorm1d(1) forward requires latent_dim == 1"
    return jnp.tile(w_fold, (sublanes, 1)).astype(jnp.float32)   # (8, D)


def encoder_reference(x, params):
    """Pure-JAX reference of the original (unfolded, biased) forward."""
    w1, b1, w21, b21, w31, b31 = params
    B = x.shape[0]
    xf = x.reshape(B, -1)
    h = xf @ w1 + b1
    mu = (h @ w21 + b21) @ w31 + b31
    mean = jnp.mean(mu)
    var = jnp.mean((mu - mean) ** 2)
    mu = (mu - mean) / jnp.sqrt(var + BN_EPS)
    n = jnp.linalg.norm(mu)
    return mu / n * jnp.tanh(n) * (2.0 / math.pi)


if __name__ == "__main__":
    # data_shape = (4, 16, 16) -> D = 1024 (lane-dense), hidden_dim = 32,
    # latent_dim = 1 (BatchNorm1d(1) on a 2-D mu requires latent_dim == 1).
    data_shape = (4, 16, 16)
    hidden_dim = 32
    latent_dim = 1
    batch = 8

    key = jax.random.PRNGKey(0)
    k_x, k_p = jax.random.split(key)
    x = jax.random.normal(k_x, (batch,) + data_shape, dtype=jnp.float32)
    params = init_params(k_p, int(math.prod(data_shape)), hidden_dim, latent_dim)

    # Fold the three linear layers once, outside the call path.
    w_rep = jax.block_until_ready(fold_params(params))

    mu = encoder_forward(x, w_rep)
    mu = jax.block_until_ready(mu)

    ref = encoder_reference(x, params)
    assert mu.shape == (batch, latent_dim)
    # Tolerance accounts for the (legitimate) reassociation of the float32
    # reductions by the layer fold and the rsqrt-based normalization path.
    assert jnp.allclose(mu, ref, atol=5e-5, rtol=1e-4), "mismatch vs reference"

    print("KERNEL_OK")
</pallas_src>

<mosaic_0001>
module attributes {stable_mosaic.version = 11 : i64} {
  func.func @encoder_kernel(%arg0: memref<8x1024xf32, #tpu.memory_space<vmem>>, %arg1: memref<8x1024xf32, #tpu.memory_space<vmem>>, %arg2: memref<8x1xf32, #tpu.memory_space<vmem>>) attributes {dimension_semantics = [], scalar_prefetch = 0 : i64, scratch_operands = 0 : i64, tpu.core_type = #tpu.core_type<tc>} {
    %c0 = arith.constant 0 : index
    %c0_0 = arith.constant 0 : index
    %0 = vector.load %arg0[%c0, %c0_0] : memref<8x1024xf32, #tpu.memory_space<vmem>>, vector<8x1024xf32>
    %c0_1 = arith.constant 0 : index
    %c0_2 = arith.constant 0 : index
    %1 = vector.load %arg1[%c0_1, %c0_2] : memref<8x1024xf32, #tpu.memory_space<vmem>>, vector<8x1024xf32>
    %2 = arith.mulf %0, %1 : vector<8x1024xf32>
    %cst = arith.constant dense<0.000000e+00> : vector<8xf32>
    %3 = vector.multi_reduction <add>, %2, %cst [1] : vector<8x1024xf32> to vector<8xf32>
    %4 = vector.shape_cast %3 : vector<8xf32> to vector<8x1xf32>
    %5 = vector.shape_cast %4 : vector<8x1xf32> to vector<1x8x1xf32>
    %cst_3 = arith.constant dense<0.000000e+00> : vector<1xf32>
    %6 = vector.multi_reduction <add>, %5, %cst_3 [1, 2] : vector<1x8x1xf32> to vector<1xf32>
    %7 = vector.shape_cast %6 : vector<1xf32> to vector<1x1x1xf32>
    %8 = vector.extract %7[0, 0, 0] : f32 from vector<1x1x1xf32>
    %cst_4 = arith.constant 1.250000e-01 : f32
    %9 = arith.mulf %8, %cst_4 : f32
    %10 = vector.broadcast %9 : f32 to vector<8x1xf32>
    %11 = arith.subf %4, %10 : vector<8x1xf32>
    %12 = arith.mulf %11, %11 : vector<8x1xf32>
    %13 = vector.shape_cast %12 : vector<8x1xf32> to vector<1x8x1xf32>
    %cst_5 = arith.constant dense<0.000000e+00> : vector<1xf32>
    %14 = vector.multi_reduction <add>, %13, %cst_5 [1, 2] : vector<1x8x1xf32> to vector<1xf32>
    %15 = vector.shape_cast %14 : vector<1xf32> to vector<1x1x1xf32>
    %16 = vector.extract %15[0, 0, 0] : f32 from vector<1x1x1xf32>
    %cst_6 = arith.constant 1.250000e-01 : f32
    %17 = arith.mulf %16, %cst_6 : f32
    %cst_7 = arith.constant 9.99999974E-6 : f32
    %18 = arith.addf %17, %cst_7 : f32
    %19 = math.rsqrt %18 : f32
    %20 = arith.mulf %19, %19 : f32
    %21 = arith.mulf %16, %20 : f32
    %22 = math.rsqrt %21 : f32
    %23 = arith.mulf %21, %22 : f32
    %24 = arith.mulf %19, %22 : f32
    %25 = math.tanh %23 : f32
    %26 = arith.mulf %24, %25 : f32
    %cst_8 = arith.constant 0.636619746 : f32
    %27 = arith.mulf %26, %cst_8 : f32
    %28 = vector.broadcast %27 : f32 to vector<8x1xf32>
    %29 = arith.mulf %11, %28 : vector<8x1xf32>
    %c0_9 = arith.constant 0 : index
    %c0_10 = arith.constant 0 : index
    %30 = vector.load %arg2[%c0_9, %c0_10] : memref<8x1xf32, #tpu.memory_space<vmem>>, vector<8x1xf32>
    tpu.vector_store %arg2[%c0_9, %c0_10], %29 {strides = array<i32>} : memref<8x1xf32, #tpu.memory_space<vmem>>, vector<8x1xf32>,
    return
  }
}

</mosaic_0001>

<llo_original>
// kernel: tpu_custom_call.1
$region0: #{tpu_custom_call.1}
  #allocation0 [shape = 'u32[]', space=smem, size = 0x4, offset = 0x4, fixed_abs, tag = 'smem constant byte address 0x4 - core index']
  #allocation1 [shape = 'u32[144,128]{1,0:T(1,128)}', space=vmem, size = 0x12000, scoped, tag = 'internal scratch']
  %s0 = inlined_call_operand.hbm [shape: f32[8,1024], index: 0, kind: input, shape index: {}]
  %s1 = inlined_call_operand.hbm [shape: f32[8,1024], index: 1, kind: input, shape index: {}]
  %s2 = inlined_call_operand.vmem [shape: f32[8,1], index: 2, kind: output, shape index: {}]
  %s3 = sld [smem:[#allocation0]]
  $region26: #{tpu_custom_call.1} parent=0
    _
  %s5 = ssub.s32 1, %s3
  %s6 = scalar_select 0, %s5, %s3
  $region1: #{tpu_custom_call.1} parent=0
    #allocation2 [shape = 'u8[32768]{0}', space=vmem, size = 0x8000, scoped, tag = 'input window, operand 0, single buffered']
    #allocation3 [shape = 's32[1]{0}', space=sflag, size = 0x4, scoped, tag = 'scoped memory for tpu_custom_call.1']
    #allocation4 [shape = 'u8[32768]{0}', space=vmem, size = 0x8000, scoped, tag = 'input window, operand 1, single buffered']
    #allocation5 [shape = 's32[1]{0}', space=sflag, size = 0x4, scoped, tag = 'scoped memory for tpu_custom_call.1']
    %7 = vsyncpa [#allocation3], 0
    %8 = vsyncpa [#allocation5], 0
    // Predicated region
    $region2: #{tpu_custom_call.1} parent=1 // pred_check
      _
    $region3: #{tpu_custom_call.1} parent=1 // pred_check_branch
      %10 = sbr.rel (0) target = $region5
    $region4: #{tpu_custom_call.1} parent=1 // pred_region
      %s12 = ssub.s32 1024, 1024
      %13 = vsyncadd [#allocation3], %s12
      %s15 = sshll.u32 [#allocation2], 4
      %s16 = int_to_ptr.vmem [resolvable:$true] %s15
      %18 = dma.hbm_to_vmem [thread:$0]  %s0, 1024, %s16, [#allocation3]
    $region5: #{tpu_custom_call.1} parent=1 // pred_fallthru
      _
    // Predicated region
    $region6: #{tpu_custom_call.1} parent=1 // pred_check
      _
    $region7: #{tpu_custom_call.1} parent=1 // pred_check_branch
      %20 = sbr.rel (0) target = $region9
    $region8: #{tpu_custom_call.1} parent=1 // pred_region
      %s22 = ssub.s32 1024, 1024
      %23 = vsyncadd [#allocation5], %s22
      %s25 = sshll.u32 [#allocation4], 4
      %s26 = int_to_ptr.vmem [resolvable:$true] %s25
      %28 = dma.hbm_to_vmem [thread:$0]  %s1, 1024, %s26, [#allocation5]
    $region9: #{tpu_custom_call.1} parent=1 // pred_fallthru
      _
    // Predicated region
    $region10: #{tpu_custom_call.1} parent=1 // pred_check
      _
    $region11: #{tpu_custom_call.1} parent=1 // pred_check_branch
      %30 = sbr.rel (0) target = $region13
    $region12: #{tpu_custom_call.1} parent=1 // pred_region
      %31 = dma.done [#allocation3], 1024
    $region13: #{tpu_custom_call.1} parent=1 // pred_fallthru
      _
    // Predicated region
    $region14: #{tpu_custom_call.1} parent=1 // pred_check
      _
    $region15: #{tpu_custom_call.1} parent=1 // pred_check_branch
      %33 = sbr.rel (0) target = $region17
    $region16: #{tpu_custom_call.1} parent=1 // pred_region
      %34 = dma.done [#allocation5], 1024
    $region17: #{tpu_custom_call.1} parent=1 // pred_fallthru
      _
    %v35 = vld [vmem:[#allocation2] sm:$0xff]
    %v36 = vld [vmem:[#allocation2 + $0x8] sm:$0xff]
    %v37 = vld [vmem:[#allocation2 + $0x10] sm:$0xff]
    %v38 = vld [vmem:[#allocation2 + $0x18] sm:$0xff]
    %v39 = vld [vmem:[#allocation2 + $0x20] sm:$0xff]
    %v40 = vld [vmem:[#allocation2 + $0x28] sm:$0xff]
    %v41 = vld [vmem:[#allocation2 + $0x30] sm:$0xff]
    %v42 = vld [vmem:[#allocation2 + $0x38] sm:$0xff]
    %v43 = vld [vmem:[#allocation4] sm:$0xff]
    %v44 = vld [vmem:[#allocation4 + $0x8] sm:$0xff]
    %v45 = vld [vmem:[#allocation4 + $0x10] sm:$0xff]
    %v46 = vld [vmem:[#allocation4 + $0x18] sm:$0xff]
    %v47 = vld [vmem:[#allocation4 + $0x20] sm:$0xff]
    %v48 = vld [vmem:[#allocation4 + $0x28] sm:$0xff]
    %v49 = vld [vmem:[#allocation4 + $0x30] sm:$0xff]
    %v50 = vld [vmem:[#allocation4 + $0x38] sm:$0xff]
    %v51 = vmul.f32 %v35, %v43
    %v52 = vmul.f32 %v36, %v44
    %v53 = vmul.f32 %v37, %v45
    %v54 = vmul.f32 %v38, %v46
    %v55 = vmul.f32 %v39, %v47
    %v56 = vmul.f32 %v40, %v48
    %v57 = vmul.f32 %v41, %v49
    %v58 = vmul.f32 %v42, %v50
    %v59 = vadd.f32 %v51, %v52
    %v60 = vadd.f32 %v59, %v53
    %v61 = vadd.f32 %v60, %v54
    %v62 = vadd.f32 %v61, %v55
    %v63 = vadd.f32 %v62, %v56
    %v64 = vadd.f32 %v63, %v57
    %v65 = vadd.f32 %v64, %v58
    %66 = vadd.xlane.f32.xlu0 %v65
    %v67 = vpop.xlane.xlu0 %66
    %vm68 = vcmask 7168
    %v69 = vsel %vm68, %v67, 0.0
    %70 = vadd.xlane.f32.xlu0 %v69
    %v71 = vpop.xlane.xlu0 %70
    %v72 = vrot.slane %v71, 4
    %v73 = vadd.f32 %v71, %v72
    %v74 = vrot.slane %v73, 2
    %v75 = vadd.f32 %v73, %v74
    %v76 = vrot.slane %v75, 1
    %v77 = vadd.f32 %v75, %v76
    %s78 = vtos %v77
    %s79 = smul.f32 %s78, 0.125
    %v80 = vstv %s79
    %v81 = vsub.f32 %v67, %v80
    %v82 = vmul.f32 %v81, %v81
    %v83 = vsel %vm68, %v82, 0.0
    %84 = vadd.xlane.f32.xlu0 %v83
    %v85 = vpop.xlane.xlu0 %84
    %v86 = vrot.slane %v85, 4
    %v87 = vadd.f32 %v85, %v86
    %v88 = vrot.slane %v87, 2
    %v89 = vadd.f32 %v87, %v88
    %v90 = vrot.slane %v89, 1
    %v91 = vadd.f32 %v89, %v90
    %s92 = vtos %v91
    %s93 = smul.f32 %s92, 0.125
    %s94 = sadd.f32 %s93, 1e-05
    %v95 = vstv %s94
    %v96 = vrsqrt.pop %v95
    %s97 = vtos %v96
    %s98 = smul.f32 %s97, %s97
    %s99 = smul.f32 %s92, %s98
    %v100 = vstv %s99
    %v101 = vrsqrt.pop %v100
    %s102 = vtos %v101
    %s103 = smul.f32 %s99, %s102
    %s104 = smul.f32 %s97, %s102
    %v105 = vstv %s103
    %v106 = vtanh.pop %v105
    %s107 = vtos %v106
    %s108 = smul.f32 %s104, %s107
    %s109 = smul.f32 %s108, 0.63661975
    %v110 = vstv %s109
    %v111 = vmul.f32 %v81, %v110
    %112 = vst.msk [vmem:[%s2] sm:$0xff] %vm68, %v111
    // Predicated region
    $region18: #{tpu_custom_call.1} parent=1 // pred_check
      _
    $region19: #{tpu_custom_call.1} parent=1 // pred_check_branch
      %114 = sbr.rel (0) target = $region21
    $region20: #{tpu_custom_call.1} parent=1 // pred_region
      _
    $region21: #{tpu_custom_call.1} parent=1 // pred_fallthru
      _
    // Predicated region
    $region22: #{tpu_custom_call.1} parent=1 // pred_check
      _
    $region23: #{tpu_custom_call.1} parent=1 // pred_check_branch
      %116 = sbr.rel (0) target = $region25
    $region24: #{tpu_custom_call.1} parent=1 // pred_region
      _
    $region25: #{tpu_custom_call.1} parent=1 // pred_fallthru
      _
    %117 = vsyncpa [#allocation3], 1
    %118 = vsyncpa [#allocation5], 1

</llo_original>
